<compile_context>
chip_gen: v7x
topology: tpu7x:2x2x1
jax: 0.10.0
libtpu: 0.0.40
codegen_flags: <defaults>
</compile_context>

<pallas_src>
import jax
import jax.numpy as jnp
from jax.experimental import pallas as pl
from jax.experimental.pallas import tpu as pltpu

# Module hyperparameters (synthetic stand-ins for `input_dim` / `nodes_l1`)
INPUT_DIM = 64      # input_dim = data1[:, :-1].shape[1]
NODES_L1 = 32       # nodes_l1
BATCH = 512         # demo batch: 2 grid steps of 256 lanes each


def autoencoder_kernel(xT_ref, w1_ref, b1_ref, w2_ref, b2_ref, oT_ref):
    """Fused encoder->decoder forward for one batch-on-lanes tile.

    xT_ref : [D, Bblk]  input tile, transposed (bf16, VMEM)
    w1_ref : [H, D]     encoder weight, PyTorch [out, in] layout (bf16)
    b1_ref : [H, 1]     encoder bias (f32)
    w2_ref : [D, H]     decoder weight, PyTorch [out, in] layout (bf16)
    b2_ref : [D, 1]     decoder bias (f32)
    oT_ref : [D, Bblk]  output tile (transposed)
    """
    xT = xT_ref[...]                                             # bf16 [D, Bblk]
    # encoder1: h^T = relu(W1 @ x^T + b1)   -> [H, Bblk], f32 accumulation
    h = jnp.dot(w1_ref[...], xT, preferred_element_type=jnp.float32)
    h = jnp.maximum(h + b1_ref[...], 0.0)
    # decoder1: y^T = W2 @ h^T + b2         -> [D, Bblk], f32 accumulation
    y = jnp.dot(w2_ref[...], h.astype(w2_ref.dtype),
                preferred_element_type=jnp.float32) + b2_ref[...]
    oT_ref[...] = jax.nn.sigmoid(y).astype(oT_ref.dtype)


def autoencoder1_reference(x, w1, b1, w2, b2):
    """Pure-JAX (f32) reference matching the PyTorch forward."""
    h = jnp.maximum(x @ w1.T + b1, 0.0)
    y = h @ w2.T + b2
    return jax.nn.sigmoid(y)


def autoencoder1_forward(x, w1, b1, w2, b2, *, block_b=256,
                         compute_dtype=jnp.bfloat16):
    """x: [B, D] f32.  w1: [H, D], b1: [H], w2: [D, H], b2: [D]
    (PyTorch nn.Linear convention: weight is [out_features, in_features])."""
    B, D = x.shape
    H = w1.shape[0]

    # Tiny problems are latency-bound: custom-call overhead exceeds compute,
    # so let XLA fuse the two GEMMs + activations directly.
    if B < 128:
        return autoencoder1_reference(x, w1, b1, w2, b2)

    # Glue: batch-on-lanes layout + bf16 matmul operands (f32 biases).
    Bp = block_b * pl.cdiv(B, block_b)                 # pad batch to tile mult
    xT = x.T.astype(compute_dtype)                     # [D, B]
    if Bp != B:
        xT = jnp.pad(xT, ((0, 0), (0, Bp - B)))        # zero-pad extra lanes
    w1c = jnp.asarray(w1, dtype=compute_dtype)         # [H, D]
    w2c = jnp.asarray(w2, dtype=compute_dtype)         # [D, H]
    b1r = jnp.asarray(b1, dtype=jnp.float32).reshape(H, 1)
    b2r = jnp.asarray(b2, dtype=jnp.float32).reshape(D, 1)

    grid = (Bp // block_b,)
    # VMEM footprint per step is ~100 KiB (weights ~8 KiB resident via the
    # constant (0,0) index maps + one bf16 x tile + one f32 out tile), so no
    # vmem_limit override is needed on any generation; re-budget only if
    # block_b is pushed into the tens of thousands (v7x has 64 MiB physical).
    outT = pl.pallas_call(
        autoencoder_kernel,
        out_shape=jax.ShapeDtypeStruct((D, Bp), x.dtype),
        grid_spec=pltpu.PrefetchScalarGridSpec(
            num_scalar_prefetch=0,
            grid=grid,
            in_specs=[
                pl.BlockSpec((D, block_b), lambda i: (0, i)),  # x^T tile (streamed)
                pl.BlockSpec((H, D), lambda i: (0, 0)),        # W1 (resident)
                pl.BlockSpec((H, 1), lambda i: (0, 0)),        # b1 (resident)
                pl.BlockSpec((D, H), lambda i: (0, 0)),        # W2 (resident)
                pl.BlockSpec((D, 1), lambda i: (0, 0)),        # b2 (resident)
            ],
            out_specs=pl.BlockSpec((D, block_b), lambda i: (0, i)),
        ),
        compiler_params=pltpu.CompilerParams(
            dimension_semantics=("parallel",)),
    )(xT, w1c, b1r, w2c, b2r)

    # Undo padding + transpose back to [B, D] (layout plumbing, not compute).
    return outT[:, :B].T


if __name__ == "__main__":
    key = jax.random.PRNGKey(0)
    kx, k1, k2, k3, k4 = jax.random.split(key, 5)

    # Deterministic synthetic parameters (PyTorch nn.Linear shapes: [out, in]).
    x = jax.random.normal(kx, (BATCH, INPUT_DIM), dtype=jnp.float32)
    w1 = jax.random.normal(k1, (NODES_L1, INPUT_DIM), dtype=jnp.float32) * 0.1
    b1 = jax.random.normal(k2, (NODES_L1,), dtype=jnp.float32) * 0.1
    w2 = jax.random.normal(k3, (INPUT_DIM, NODES_L1), dtype=jnp.float32) * 0.1
    b2 = jax.random.normal(k4, (INPUT_DIM,), dtype=jnp.float32) * 0.1

    out = autoencoder1_forward(x, w1, b1, w2, b2, block_b=256)
    out = jax.block_until_ready(out)

    ref = autoencoder1_reference(x, w1, b1, w2, b2)
    assert out.shape == (BATCH, INPUT_DIM)
    max_err = float(jnp.max(jnp.abs(out - ref)))
    # bf16 matmul operands with f32 accumulation: expect ~1e-3 abs error on
    # sigmoid outputs in [0, 1].
    assert max_err < 2e-2, f"mismatch vs reference (max abs err {max_err})"

    print("KERNEL_OK")
</pallas_src>

<mosaic_0001>
module attributes {stable_mosaic.version = 11 : i64} {
  func.func @autoencoder_kernel(%arg0: i32, %arg1: memref<64x256xbf16, #tpu.memory_space<vmem>>, %arg2: memref<32x64xbf16, #tpu.memory_space<vmem>>, %arg3: memref<32x1xf32, #tpu.memory_space<vmem>>, %arg4: memref<64x32xbf16, #tpu.memory_space<vmem>>, %arg5: memref<64x1xf32, #tpu.memory_space<vmem>>, %arg6: memref<64x256xf32, #tpu.memory_space<vmem>>) attributes {dimension_semantics = [#tpu.dimension_semantics<parallel>], iteration_bounds = array<i64: 2>, scalar_prefetch = 0 : i64, scratch_operands = 0 : i64, tpu.core_type = #tpu.core_type<tc>, window_params = [{transform_indices = @transform_0, window_bounds = array<i64: 64, 256>}, {pipeline_mode = #tpu.pipeline_mode<synchronous>, transform_indices = @transform_1, window_bounds = array<i64: 32, 64>}, {pipeline_mode = #tpu.pipeline_mode<synchronous>, transform_indices = @transform_2, window_bounds = array<i64: 32, 1>}, {pipeline_mode = #tpu.pipeline_mode<synchronous>, transform_indices = @transform_3, window_bounds = array<i64: 64, 32>}, {pipeline_mode = #tpu.pipeline_mode<synchronous>, transform_indices = @transform_4, window_bounds = array<i64: 64, 1>}, {transform_indices = @transform_5, window_bounds = array<i64: 64, 256>}]} {
    %c0 = arith.constant 0 : index
    %c0_0 = arith.constant 0 : index
    %0 = vector.load %arg1[%c0, %c0_0] : memref<64x256xbf16, #tpu.memory_space<vmem>>, vector<64x256xbf16>
    %c0_1 = arith.constant 0 : index
    %c0_2 = arith.constant 0 : index
    %1 = vector.load %arg2[%c0_1, %c0_2] : memref<32x64xbf16, #tpu.memory_space<vmem>>, vector<32x64xbf16>
    %cst = arith.constant dense<0.000000e+00> : vector<32x256xf32>
    %2 = tpu.matmul %1, %0, %cst {dimension_numbers = #tpu.dot_dimension_numbers<[1], [0], [0], [1], [0, 0, 1, 1], [], []>} : vector<32x64xbf16>, vector<64x256xbf16>, vector<32x256xf32> -> vector<32x256xf32>
    %c0_3 = arith.constant 0 : index
    %c0_4 = arith.constant 0 : index
    %3 = vector.load %arg3[%c0_3, %c0_4] : memref<32x1xf32, #tpu.memory_space<vmem>>, vector<32x1xf32>
    %4 = vector.broadcast %3 : vector<32x1xf32> to vector<32x256xf32>
    %5 = arith.addf %2, %4 : vector<32x256xf32>
    %cst_5 = arith.constant 0.000000e+00 : f32
    %6 = vector.broadcast %cst_5 : f32 to vector<32x256xf32>
    %7 = arith.maximumf %5, %6 : vector<32x256xf32>
    %c0_6 = arith.constant 0 : index
    %c0_7 = arith.constant 0 : index
    %8 = vector.load %arg4[%c0_6, %c0_7] : memref<64x32xbf16, #tpu.memory_space<vmem>>, vector<64x32xbf16>
    %9 = arith.truncf %7 : vector<32x256xf32> to vector<32x256xbf16>
    %cst_8 = arith.constant dense<0.000000e+00> : vector<64x256xf32>
    %10 = tpu.matmul %8, %9, %cst_8 {dimension_numbers = #tpu.dot_dimension_numbers<[1], [0], [0], [1], [0, 0, 1, 1], [], []>} : vector<64x32xbf16>, vector<32x256xbf16>, vector<64x256xf32> -> vector<64x256xf32>
    %c0_9 = arith.constant 0 : index
    %c0_10 = arith.constant 0 : index
    %11 = vector.load %arg5[%c0_9, %c0_10] : memref<64x1xf32, #tpu.memory_space<vmem>>, vector<64x1xf32>
    %12 = vector.broadcast %11 : vector<64x1xf32> to vector<64x256xf32>
    %13 = arith.addf %10, %12 : vector<64x256xf32>
    %14 = arith.negf %13 : vector<64x256xf32>
    %15 = math.exp %14 : vector<64x256xf32>
    %cst_11 = arith.constant 1.000000e+00 : f32
    %16 = vector.broadcast %cst_11 : f32 to vector<64x256xf32>
    %17 = arith.addf %16, %15 : vector<64x256xf32>
    %18 = arith.divf %16, %17 : vector<64x256xf32>
    %c0_12 = arith.constant 0 : index
    %c0_13 = arith.constant 0 : index
    %19 = vector.load %arg6[%c0_12, %c0_13] : memref<64x256xf32, #tpu.memory_space<vmem>>, vector<64x256xf32>
    tpu.vector_store %arg6[%c0_12, %c0_13], %18 {strides = array<i32>} : memref<64x256xf32, #tpu.memory_space<vmem>>, vector<64x256xf32>,
    return
  }
  func.func @transform_0(%arg0: i32) -> (i32, i32) {
    %c0_i32 = arith.constant 0 : i32
    %c0_i32_0 = arith.constant 0 : i32
    return %c0_i32, %arg0 : i32, i32
  }
  func.func @transform_1(%arg0: i32) -> (i32, i32) {
    %c0_i32 = arith.constant 0 : i32
    %c0_i32_0 = arith.constant 0 : i32
    %c0_i32_1 = arith.constant 0 : i32
    return %c0_i32, %c0_i32_0 : i32, i32
  }
  func.func @transform_2(%arg0: i32) -> (i32, i32) {
    %c0_i32 = arith.constant 0 : i32
    %c0_i32_0 = arith.constant 0 : i32
    %c0_i32_1 = arith.constant 0 : i32
    return %c0_i32, %c0_i32_0 : i32, i32
  }
  func.func @transform_3(%arg0: i32) -> (i32, i32) {
    %c0_i32 = arith.constant 0 : i32
    %c0_i32_0 = arith.constant 0 : i32
    %c0_i32_1 = arith.constant 0 : i32
    return %c0_i32, %c0_i32_0 : i32, i32
  }
  func.func @transform_4(%arg0: i32) -> (i32, i32) {
    %c0_i32 = arith.constant 0 : i32
    %c0_i32_0 = arith.constant 0 : i32
    %c0_i32_1 = arith.constant 0 : i32
    return %c0_i32, %c0_i32_0 : i32, i32
  }
  func.func @transform_5(%arg0: i32) -> (i32, i32) {
    %c0_i32 = arith.constant 0 : i32
    %c0_i32_0 = arith.constant 0 : i32
    return %c0_i32, %arg0 : i32, i32
  }
}

</mosaic_0001>

<llo_original>
// kernel: tpu_custom_call.1
$region0: #{tpu_custom_call.1}
  #allocation0 [shape = 'u32[]', space=smem, size = 0x4, offset = 0x4, fixed_abs, tag = 'smem constant byte address 0x4 - core index']
  #allocation1 [shape = 'u32[144,128]{1,0:T(1,128)}', space=vmem, size = 0x12000, scoped, tag = 'internal scratch']
  %s0 = inlined_call_operand.vmem [shape: bf16[64,512], index: 0, kind: input, shape index: {}]
  %s1 = inlined_call_operand.hbm [shape: bf16[32,64], index: 1, kind: input, shape index: {}]
  %s2 = inlined_call_operand.vmem [shape: f32[32,1], index: 2, kind: input, shape index: {}]
  %s3 = inlined_call_operand.vmem [shape: bf16[64,32], index: 3, kind: input, shape index: {}]
  %s4 = inlined_call_operand.vmem [shape: f32[64,1], index: 4, kind: input, shape index: {}]
  %s5 = inlined_call_operand.hbm [shape: f32[64,512], index: 5, kind: output, shape index: {}]
  %s6 = sld [smem:[#allocation0]]
  $region95: #{tpu_custom_call.1} parent=0
    _
  %s8 = ssub.s32 1, %s6
  %s9 = scalar_select 0, %s8, %s6
  $region1: #{tpu_custom_call.1} parent=0
    #allocation2 [shape = 'u8[65536]{0}', space=vmem, size = 0x10000, scoped, tag = 'input window, operand 0']
    #allocation3 [shape = 'u8[8192]{0}', space=vmem, size = 0x2000, scoped, tag = 'input window, operand 1, single buffered']
    #allocation4 [shape = 's32[2]{0}', space=sflag, size = 0x8, scoped, tag = 'scoped memory for tpu_custom_call.1']
    #allocation5 [shape = 's32[2]{0}', space=sflag, size = 0x8, scoped, tag = 'scoped memory for tpu_custom_call.1']
    #allocation6 [shape = 'u8[131072]{0}', space=vmem, size = 0x20000, scoped, tag = 'output window, operand 0']
    %10 = vsyncpa [#allocation4], 0
    %11 = vsyncpa [#allocation5], 0
    %s12 = scalar_lea.sflag [#allocation5], 1
    %13 = vsyncpa %s12, 0
    loop: start=0, step=1, limit=4
    $region2: #{tpu_custom_call.1} parent=1 // loop_pre_header
      _
    $region3: #{tpu_custom_call.1} parent=1 // loop_header
      %s15 = sphi 0, %s19
      %p16 = scmp.ge.s32.totalorder %s15, 4
      %s25 = sphi 0, %s27
      %s28 = sphi 0, %s25
      %s29 = sphi 0, %s28
      %s45 = sphi 0, %s29
      %s49 = sphi 0, %s49
      %s51 = sphi 0, %s49
      %s52 = sphi 0, %s51
      %s66 = sphi 0, %s52
      %s70 = sphi 0, %s70
      %s72 = sphi 0, %s70
      %s73 = sphi 0, %s72
      %s87 = sphi 0, %s73
      %s91 = sphi 0, %s91
      %s93 = sphi 0, %s91
      %s94 = sphi 0, %s93
      %s108 = sphi 0, %s94
      %s112 = sphi 0, %s112
      %s114 = sphi 0, %s112
      %s115 = sphi 0, %s114
      %s129 = sphi 0, %s115
      %s135 = sphi 0, %s137
      %s138 = sphi 0, %s135
      %s139 = sphi 0, %s138
      %s155 = sphi 0, %s139
    $region4: #{tpu_custom_call.1} parent=1 // loop_header_branch
      %18 = sbr.rel (%p16) target = $region8
    $region5: #{tpu_custom_call.1} parent=1 // loop_body
      %s20 = ssub.s32 %s15, 1
      %s21 = ssub.s32 %s15, 2
      %s22 = sadd.s32 %s15, 1
      %s23 = ssub.s32 %s15, %s22
      %p24 = scmp.eq.s32.totalorder %s23, 0
      %s26 = sadd.s32 %s25, 1
      %s27 = scalar_select %p24, %s25, %s26
      %p30 = pneg %p24
      %p31 = scmp.eq.s32.totalorder %s15, 1
      %p32 = por %p30, %p31
      %p33 = scmp.ne.s32.totalorder %s25, %s28
      %p34 = scmp.eq.s32.totalorder %s15, 0
      %p35 = por %p33, %p34
      %p36 = scmp.ne.s32.totalorder %s25, %s28
      %p37 = scmp.eq.s32.totalorder %s20, 1
      %p38 = por %p36, %p37
      %p39 = scmp.ne.s32.totalorder %s28, %s29
      %p40 = scmp.eq.s32.totalorder %s20, 0
      %p41 = por %p39, %p40
      %p42 = scmp.ne.s32.totalorder %s28, %s29
      %p43 = scmp.eq.s32.totalorder %s21, 1
      %p44 = por %p42, %p43
      %p46 = scmp.ne.s32.totalorder %s29, %s45
      %p47 = scmp.eq.s32.totalorder %s21, 0
      %p48 = por %p46, %p47
      %s50 = sadd.s32 %s49, 1
      %p53 = scmp.eq.s32.totalorder %s15, 1
      %p54 = scmp.ne.s32.totalorder %s49, %s51
      %p55 = scmp.eq.s32.totalorder %s15, 0
      %p56 = por %p54, %p55
      %p57 = scmp.ne.s32.totalorder %s49, %s51
      %p58 = scmp.eq.s32.totalorder %s20, 1
      %p59 = por %p57, %p58
      %p60 = scmp.ne.s32.totalorder %s51, %s52
      %p61 = scmp.eq.s32.totalorder %s20, 0
      %p62 = por %p60, %p61
      %p63 = scmp.ne.s32.totalorder %s51, %s52
      %p64 = scmp.eq.s32.totalorder %s21, 1
      %p65 = por %p63, %p64
      %p67 = scmp.ne.s32.totalorder %s52, %s66
      %p68 = scmp.eq.s32.totalorder %s21, 0
      %p69 = por %p67, %p68
      %s71 = sadd.s32 %s70, 1
      %p74 = scmp.eq.s32.totalorder %s15, 1
      %p75 = scmp.ne.s32.totalorder %s70, %s72
      %p76 = scmp.eq.s32.totalorder %s15, 0
      %p77 = por %p75, %p76
      %p78 = scmp.ne.s32.totalorder %s70, %s72
      %p79 = scmp.eq.s32.totalorder %s20, 1
      %p80 = por %p78, %p79
      %p81 = scmp.ne.s32.totalorder %s72, %s73
      %p82 = scmp.eq.s32.totalorder %s20, 0
      %p83 = por %p81, %p82
      %p84 = scmp.ne.s32.totalorder %s72, %s73
      %p85 = scmp.eq.s32.totalorder %s21, 1
      %p86 = por %p84, %p85
      %p88 = scmp.ne.s32.totalorder %s73, %s87
      %p89 = scmp.eq.s32.totalorder %s21, 0
      %p90 = por %p88, %p89
      %s92 = sadd.s32 %s91, 1
      %p95 = scmp.eq.s32.totalorder %s15, 1
      %p96 = scmp.ne.s32.totalorder %s91, %s93
      %p97 = scmp.eq.s32.totalorder %s15, 0
      %p98 = por %p96, %p97
      %p99 = scmp.ne.s32.totalorder %s91, %s93
      %p100 = scmp.eq.s32.totalorder %s20, 1
      %p101 = por %p99, %p100
      %p102 = scmp.ne.s32.totalorder %s93, %s94
      %p103 = scmp.eq.s32.totalorder %s20, 0
      %p104 = por %p102, %p103
      %p105 = scmp.ne.s32.totalorder %s93, %s94
      %p106 = scmp.eq.s32.totalorder %s21, 1
      %p107 = por %p105, %p106
      %p109 = scmp.ne.s32.totalorder %s94, %s108
      %p110 = scmp.eq.s32.totalorder %s21, 0
      %p111 = por %p109, %p110
      %s113 = sadd.s32 %s112, 1
      %p116 = scmp.eq.s32.totalorder %s15, 1
      %p117 = scmp.ne.s32.totalorder %s112, %s114
      %p118 = scmp.eq.s32.totalorder %s15, 0
      %p119 = por %p117, %p118
      %p120 = scmp.ne.s32.totalorder %s112, %s114
      %p121 = scmp.eq.s32.totalorder %s20, 1
      %p122 = por %p120, %p121
      %p123 = scmp.ne.s32.totalorder %s114, %s115
      %p124 = scmp.eq.s32.totalorder %s20, 0
      %p125 = por %p123, %p124
      %p126 = scmp.ne.s32.totalorder %s114, %s115
      %p127 = scmp.eq.s32.totalorder %s21, 1
      %p128 = por %p126, %p127
      %p130 = scmp.ne.s32.totalorder %s115, %s129
      %p131 = scmp.eq.s32.totalorder %s21, 0
      %p132 = por %p130, %p131
      %s133 = ssub.s32 %s15, %s22
      %p134 = scmp.eq.s32.totalorder %s133, 0
      %s136 = sadd.s32 %s135, 1
      %s137 = scalar_select %p134, %s135, %s136
      %p140 = pneg %p134
      %p141 = scmp.eq.s32.totalorder %s15, 1
      %p142 = por %p140, %p141
      %p143 = scmp.ne.s32.totalorder %s135, %s138
      %p144 = scmp.eq.s32.totalorder %s15, 0
      %p145 = por %p143, %p144
      %p146 = scmp.ne.s32.totalorder %s135, %s138
      %p147 = scmp.eq.s32.totalorder %s20, 1
      %p148 = por %p146, %p147
      %p149 = scmp.ne.s32.totalorder %s138, %s139
      %p150 = scmp.eq.s32.totalorder %s20, 0
      %p151 = por %p149, %p150
      %p152 = scmp.ne.s32.totalorder %s138, %s139
      %p153 = scmp.eq.s32.totalorder %s21, 1
      %p154 = por %p152, %p153
      %p156 = scmp.ne.s32.totalorder %s139, %s155
      %p157 = scmp.eq.s32.totalorder %s21, 0
      %p158 = por %p156, %p157
      %p159 = scmp.le.s32.totalorder 1, %s15
      %p160 = scmp.lt.s32.totalorder %s15, 3
      %p161 = pnand %p159, %p160
      %p162 = pneg %p161
      // Predicated region
      $region9: #{tpu_custom_call.1} parent=5 // pred_check
        _
      $region10: #{tpu_custom_call.1} parent=5 // pred_check_branch
        %164 = sbr.rel (%p161) target = $region12
      $region11: #{tpu_custom_call.1} parent=5 // pred_region
        %s165 = ssub.s32 %s15, 1
        // Predicated region
        $region13: #{tpu_custom_call.1} parent=11 // pred_check
          %p166 = pneg %p62
        $region14: #{tpu_custom_call.1} parent=11 // pred_check_branch
          %168 = sbr.rel (%p166) target = $region16
        $region15: #{tpu_custom_call.1} parent=11 // pred_region
          %s170 = ssub.s32 256, 256
          %171 = vsyncadd [#allocation4], %s170
          %s172 = sshll.u32 [#allocation3], 4
          %s173 = int_to_ptr.vmem [resolvable:$true] %s172
          %178 = dma.hbm_to_vmem [thread:$0]  %s1, 256, %s173, [#allocation4], 64, 64, 4
        $region16: #{tpu_custom_call.1} parent=11 // pred_fallthru
          _
        // Predicated region
        $region17: #{tpu_custom_call.1} parent=11 // pred_check
          %p179 = pneg %p83
        $region18: #{tpu_custom_call.1} parent=11 // pred_check_branch
          %181 = sbr.rel (%p179) target = $region20
        $region19: #{tpu_custom_call.1} parent=11 // pred_region
          _
        $region20: #{tpu_custom_call.1} parent=11 // pred_fallthru
          _
        // Predicated region
        $region21: #{tpu_custom_call.1} parent=11 // pred_check
          %p182 = pneg %p104
        $region22: #{tpu_custom_call.1} parent=11 // pred_check_branch
          %184 = sbr.rel (%p182) target = $region24
        $region23: #{tpu_custom_call.1} parent=11 // pred_region
          _
        $region24: #{tpu_custom_call.1} parent=11 // pred_fallthru
          _
        // Predicated region
        $region25: #{tpu_custom_call.1} parent=11 // pred_check
          %p185 = pneg %p125
        $region26: #{tpu_custom_call.1} parent=11 // pred_check_branch
          %187 = sbr.rel (%p185) target = $region28
        $region27: #{tpu_custom_call.1} parent=11 // pred_region
          _
        $region28: #{tpu_custom_call.1} parent=11 // pred_fallthru
          _
      $region12: #{tpu_custom_call.1} parent=5 // pred_fallthru
        _
      %p188 = scmp.lt.s32.totalorder %s15, 2
      // Predicated region
      $region29: #{tpu_custom_call.1} parent=5 // pred_check
        %p189 = pneg %p188
      $region30: #{tpu_custom_call.1} parent=5 // pred_check_branch
        %191 = sbr.rel (%p189) target = $region32
      $region31: #{tpu_custom_call.1} parent=5 // pred_region
        // Predicated region
        $region33: #{tpu_custom_call.1} parent=31 // pred_check
          %p192 = pneg %p35
        $region34: #{tpu_custom_call.1} parent=31 // pred_check_branch
          %194 = sbr.rel (%p192) target = $region36
        $region35: #{tpu_custom_call.1} parent=31 // pred_region
          %s195 = sand.u32 %s25, 1
          %s196 = sand.u32 %s25, 1
          %s197 = smul.addr %s196, 64
          %s198 = scalar_lea.vmem [#allocation2], %s197
          %s199 = smul.u32 2, %s15
          %s200 = smul.addr %s199, 4
          %s201 = scalar_lea.vmem %s0, %s200
          // Predicated region
          $region37: #{tpu_custom_call.1} parent=35 // pred_check
            _
          $region38: #{tpu_custom_call.1} parent=35 // pred_check_branch
            %203 = sbr.rel (0) target = $region40
          $region39: #{tpu_custom_call.1} parent=35 // pred_region
            // Predicated region
            $region41: #{tpu_custom_call.1} parent=39 // pred_check
              _
            $region42: #{tpu_custom_call.1} parent=39 // pred_check_branch
              %205 = sbr.rel (0) target = $region44
            $region43: #{tpu_custom_call.1} parent=39 // pred_region
              // Predicated region
              $region56: #{tpu_custom_call.1} parent=43 // pred_check
                _
              $region57: #{tpu_custom_call.1} parent=43 // pred_check_branch
                %234 = sbr.rel (0) target = $region59
              $region58: #{tpu_custom_call.1} parent=43 // pred_region
                loop: start=0, step=1, limit=1
                $region60: #{tpu_custom_call.1} parent=58 // loop_pre_header
                  _
                $region61: #{tpu_custom_call.1} parent=58 // loop_header
                  %s236 = sphi 0, %s240
                  %p237 = scmp.ge.s32.totalorder %s236, 1
                  %s241 = sphi %s201, %s201
                  %s242 = sphi %s198, %s198
                $region62: #{tpu_custom_call.1} parent=58 // loop_header_branch
                  %239 = sbr.rel (%p237) target = $region66
                $region63: #{tpu_custom_call.1} parent=58 // loop_body
                  %v243 = vld [vmem:[%s241] sm:$0xff]
                  %244 = vst [vmem:[%s242] sm:$0xff] %v243
                  %v245 = vld [vmem:[%s241 + $0x10] sm:$0xff]
                  %246 = vst [vmem:[%s242 + $0x8] sm:$0xff] %v245
                  %v247 = vld [vmem:[%s241 + $0x20] sm:$0xff]
                  %248 = vst [vmem:[%s242 + $0x10] sm:$0xff] %v247
                  %v249 = vld [vmem:[%s241 + $0x30] sm:$0xff]
                  %250 = vst [vmem:[%s242 + $0x18] sm:$0xff] %v249
                  %v251 = vld [vmem:[%s241 + $0x40] sm:$0xff]
                  %252 = vst [vmem:[%s242 + $0x20] sm:$0xff] %v251
                  %v253 = vld [vmem:[%s241 + $0x50] sm:$0xff]
                  %254 = vst [vmem:[%s242 + $0x28] sm:$0xff] %v253
                  %v255 = vld [vmem:[%s241 + $0x60] sm:$0xff]
                  %256 = vst [vmem:[%s242 + $0x30] sm:$0xff] %v255
                  %v257 = vld [vmem:[%s241 + $0x70] sm:$0xff]
                  %258 = vst [vmem:[%s242 + $0x38] sm:$0xff] %v257
                $region64: #{tpu_custom_call.1} parent=58 // loop_footer
                  %s240 = sadd.s32 1, %s236
                $region65: #{tpu_custom_call.1} parent=58 // loop_footer_branch
                  %235 = sbr.rel target = $region61
                $region66: #{tpu_custom_call.1} parent=58 // loop_exit
                  _
              $region59: #{tpu_custom_call.1} parent=43 // pred_fallthru
                _
              // Predicated region
              $region67: #{tpu_custom_call.1} parent=43 // pred_check
                _
              $region68: #{tpu_custom_call.1} parent=43 // pred_check_branch
                %260 = sbr.rel target = $region70
              $region69: #{tpu_custom_call.1} parent=43 // pred_region
                _
              $region70: #{tpu_custom_call.1} parent=43 // pred_fallthru
                _
            $region44: #{tpu_custom_call.1} parent=39 // pred_fallthru
              _
            // Predicated region
            $region45: #{tpu_custom_call.1} parent=39 // pred_check
              _
            $region46: #{tpu_custom_call.1} parent=39 // pred_check_branch
              %207 = sbr.rel target = $region48
            $region47: #{tpu_custom_call.1} parent=39 // pred_region
              loop: start=0, step=1, limit=1
              $region49: #{tpu_custom_call.1} parent=47 // loop_pre_header
                _
              $region50: #{tpu_custom_call.1} parent=47 // loop_header
                %s210 = sphi 0, %s214
                %p211 = scmp.ge.s32.totalorder %s210, 1
                %s215 = sphi %s201, %s201
                %s216 = sphi %s198, %s198
              $region51: #{tpu_custom_call.1} parent=47 // loop_header_branch
                %213 = sbr.rel (%p211) target = $region55
              $region52: #{tpu_custom_call.1} parent=47 // loop_body
                %v217 = vld [vmem:[%s215] sm:$0xff]
                %218 = vst [vmem:[%s216] sm:$0xff] %v217
                %v219 = vld [vmem:[%s215 + $0x10] sm:$0xff]
                %220 = vst [vmem:[%s216 + $0x8] sm:$0xff] %v219
                %v221 = vld [vmem:[%s215 + $0x20] sm:$0xff]
                %222 = vst [vmem:[%s216 + $0x10] sm:$0xff] %v221
                %v223 = vld [vmem:[%s215 + $0x30] sm:$0xff]
                %224 = vst [vmem:[%s216 + $0x18] sm:$0xff] %v223
                %v225 = vld [vmem:[%s215 + $0x40] sm:$0xff]
                %226 = vst [vmem:[%s216 + $0x20] sm:$0xff] %v225
                %v227 = vld [vmem:[%s215 + $0x50] sm:$0xff]
                %228 = vst [vmem:[%s216 + $0x28] sm:$0xff] %v227
                %v229 = vld [vmem:[%s215 + $0x60] sm:$0xff]
                %230 = vst [vmem:[%s216 + $0x30] sm:$0xff] %v229
                %v231 = vld [vmem:[%s215 + $0x70] sm:$0xff]
                %232 = vst [vmem:[%s216 + $0x38] sm:$0xff] %v231
              $region53: #{tpu_custom_call.1} parent=47 // loop_footer
                %s214 = sadd.s32 1, %s210
              $region54: #{tpu_custom_call.1} parent=47 // loop_footer_branch
                %209 = sbr.rel target = $region50
              $region55: #{tpu_custom_call.1} parent=47 // loop_exit
                _
            $region48: #{tpu_custom_call.1} parent=39 // pred_fallthru
              _
          $region40: #{tpu_custom_call.1} parent=35 // pred_fallthru
            _
          %261 = vnop
        $region36: #{tpu_custom_call.1} parent=31 // pred_fallthru
          _
      $region32: #{tpu_custom_call.1} parent=5 // pred_fallthru
        _
      %p262 = scmp.le.s32.totalorder 1, %s15
      %p263 = scmp.lt.s32.totalorder %s15, 3
      %p264 = pnand %p262, %p263
      %p265 = pneg %p264
      // Predicated region
      $region71: #{tpu_custom_call.1} parent=5 // pred_check
        _
      $region72: #{tpu_custom_call.1} parent=5 // pred_check_branch
        %267 = sbr.rel (%p264) target = $region74
      $region73: #{tpu_custom_call.1} parent=5 // pred_region
        %s268 = ssub.s32 %s15, 1
        %s269 = sand.u32 %s28, 1
        %s270 = sand.u32 %s28, 1
        %s271 = smul.addr %s270, 64
        %s272 = scalar_lea.vmem [#allocation2], %s271
        // Predicated region
        $region75: #{tpu_custom_call.1} parent=73 // pred_check
          %p273 = pneg %p41
        $region76: #{tpu_custom_call.1} parent=73 // pred_check_branch
          %275 = sbr.rel (%p273) target = $region78
        $region77: #{tpu_custom_call.1} parent=73 // pred_region
          _
        $region78: #{tpu_custom_call.1} parent=73 // pred_fallthru
          _
        // Predicated region
        $region79: #{tpu_custom_call.1} parent=73 // pred_check
          %p276 = pneg %p62
        $region80: #{tpu_custom_call.1} parent=73 // pred_check_branch
          %278 = sbr.rel (%p276) target = $region82
        $region81: #{tpu_custom_call.1} parent=73 // pred_region
          %279 = dma.done [#allocation4], 256
        $region82: #{tpu_custom_call.1} parent=73 // pred_fallthru
          _
        %s280 = sand.u32 %s28, 1
        %s281 = sand.u32 %s28, 1
        %s282 = smul.addr %s281, 64
        %s283 = scalar_lea.vmem [#allocation2], %s282
        %p284 = pneg %p41
        %p285 = pneg %p38
        %p286 = pneg %p62
        %p287 = pneg %p59
        %p288 = pneg %p83
        %p289 = pneg %p80
        %p290 = pneg %p104
        %p291 = pneg %p101
        %p292 = pneg %p125
        %p293 = pneg %p122
        %p294 = pneg %p151
        %p295 = pneg %p148
        %s296 = sand.u32 %s138, 1
        %s297 = scalar_lea.sflag [#allocation5], %s296
        %s298 = sand.u32 %s138, 1
        %s299 = smul.addr %s298, 128
        %s300 = scalar_lea.vmem [#allocation6], %s299
        %s301 = smul.u32 2, %s20
        %s302 = smul.u32 2, %s20
        %v304 = vld [vmem:[%s272] sm:$0xff]
        %v305 = vld [vmem:[%s272 + $0x8] sm:$0xff]
        %v306 = vld [vmem:[%s272 + $0x10] sm:$0xff]
        %v307 = vld [vmem:[%s272 + $0x18] sm:$0xff]
        %v308 = vld [vmem:[%s272 + $0x20] sm:$0xff]
        %v309 = vld [vmem:[%s272 + $0x28] sm:$0xff]
        %v310 = vld [vmem:[%s272 + $0x30] sm:$0xff]
        %v311 = vld [vmem:[%s272 + $0x38] sm:$0xff]
        %v312 = vld [vmem:[#allocation3] sm:$0xf]
        %v313 = vld [vmem:[#allocation3 + $0x4] sm:$0xf]
        %v314 = vld [vmem:[#allocation3 + $0x8] sm:$0xf]
        %v315 = vld [vmem:[#allocation3 + $0xc] sm:$0xf]
        %v316 = vld [vmem:[%s2] sm:$0xff]
        %v317 = vld [vmem:[%s2 + $0x8] sm:$0xff]
        %v318 = vld [vmem:[%s2 + $0x10] sm:$0xff]
        %v319 = vld [vmem:[%s2 + $0x18] sm:$0xff]
        %321 = vset.pattern.permute.xlu0 0
        %322 = vperm.xlu0 %321, %v316
        %v323 = vpop.permute.xlu0 %322
        %326 = vset.pattern.permute.xlu0 0
        %327 = vperm.xlu0 %326, %v317
        %v328 = vpop.permute.xlu0 %327
        %331 = vset.pattern.permute.xlu0 0
        %332 = vperm.xlu0 %331, %v318
        %v333 = vpop.permute.xlu0 %332
        %336 = vset.pattern.permute.xlu0 0
        %337 = vperm.xlu0 %336, %v319
        %v338 = vpop.permute.xlu0 %337
        %v344 = vunpack.c.l.b16 %v312
        %v345 = vunpack.c.l.b16 %v313
        %v346 = vunpack.c.l.b16 %v314
        %v347 = vunpack.c.l.b16 %v315
        %v348 = vpack.c.b16 %v345, %v344
        %v349 = vpack.c.b16 %v347, %v346
        %v358 = vunpack.c.l.b16 %v304
        %v359 = vunpack.c.h.b16 %v304
        %v360 = vunpack.c.l.b16 %v305
        %v361 = vunpack.c.h.b16 %v305
        %v362 = vunpack.c.l.b16 %v306
        %v363 = vunpack.c.h.b16 %v306
        %v364 = vunpack.c.l.b16 %v307
        %v365 = vunpack.c.h.b16 %v307
        %v366 = vunpack.c.l.b16 %v308
        %v367 = vunpack.c.h.b16 %v308
        %v368 = vunpack.c.l.b16 %v309
        %v369 = vunpack.c.h.b16 %v309
        %v370 = vunpack.c.l.b16 %v310
        %v371 = vunpack.c.h.b16 %v310
        %v372 = vunpack.c.l.b16 %v311
        %v373 = vunpack.c.h.b16 %v311
        %v374 = vpack.c.b16 %v360, %v358
        %v375 = vpack.c.b16 %v361, %v359
        %v376 = vpack.c.b16 %v364, %v362
        %v377 = vpack.c.b16 %v365, %v363
        %v378 = vpack.c.b16 %v368, %v366
        %v379 = vpack.c.b16 %v369, %v367
        %v380 = vpack.c.b16 %v372, %v370
        %v381 = vpack.c.b16 %v373, %v371
        %vm390 = vcmask 523264
        %v392 = vsel %vm390, %v348, 0
        %v395 = vsel %vm390, %v349, 0
        %397 = vmatprep.subr.bf16.mxu0 %v375
        %398 = vmatpush1.bf16.msra.mxu0 %v374
        %399 = vmatprep.subr.bf16.mxu0 %v377
        %400 = vmatpush1.bf16.msra.mxu0 %v376
        %401 = vmatprep.subr.bf16.mxu0 %v379
        %402 = vmatpush1.bf16.msra.mxu0 %v378
        %403 = vmatprep.subr.bf16.mxu0 %v381
        %404 = vmatpush1.bf16.msra.mxu0 %v380
        %405 = vmatprep.subr.bf16.mxu0 0
        %406 = vmatpush1.bf16.msra.mxu0 0
        %407 = vmatprep.subr.bf16.mxu0 0
        %408 = vmatpush1.bf16.msra.mxu0 0
        %409 = vmatprep.subr.bf16.mxu0 0
        %410 = vmatpush1.bf16.msra.mxu0 0
        %411 = vmatprep.subr.bf16.mxu0 0
        %412 = vmatpush1.bf16.msra.mxu0 0
        %413 = vmatprep.subr.bf16.mxu0 0
        %414 = vmatpush1.bf16.msra.mxu0 0
        %415 = vmatprep.subr.bf16.mxu0 0
        %416 = vmatpush1.bf16.msra.mxu0 0
        %417 = vmatprep.subr.bf16.mxu0 0
        %418 = vmatpush1.bf16.msra.mxu0 0
        %419 = vmatprep.subr.bf16.mxu0 0
        %420 = vmatpush1.bf16.msra.mxu0 0
        %421 = vmatprep.subr.bf16.mxu0 0
        %422 = vmatpush1.bf16.msra.mxu0 0
        %423 = vmatprep.subr.bf16.mxu0 0
        %424 = vmatpush1.bf16.msra.mxu0 0
        %425 = vmatprep.subr.bf16.mxu0 0
        %426 = vmatpush1.bf16.msra.mxu0 0
        %427 = vmatprep.subr.bf16.mxu0 0
        %428 = vmatpush1.bf16.msra.mxu0 0
        %429 = vmatprep.mubr.bf16.mxu0 0
        %430 = vmatmul.mubr.bf16.gmra.mrb[0].mxu0 %v392
        %v431 = vpop.f32.mrb[0].mxu0
        %v432 = vadd.f32 %v323, %v431
        %v433 = vpop.f32.mrb[0].mxu0
        %v434 = vadd.f32 %v323, %v433
        %v435 = vpop.f32.mrb[0].mxu0
        %v436 = vadd.f32 %v328, %v435
        %v437 = vpop.f32.mrb[0].mxu0
        %v438 = vadd.f32 %v328, %v437
        %439 = vmatprep.mubr.bf16.mxu0 0
        %440 = vmatmul.mubr.bf16.gmra.mrb[0].mxu0 %v395
        %v441 = vpop.f32.mrb[0].mxu0
        %v442 = vadd.f32 %v333, %v441
        %v443 = vpop.f32.mrb[0].mxu0
        %v444 = vadd.f32 %v333, %v443
        %v445 = vpop.f32.mrb[0].mxu0
        %v446 = vadd.f32 %v338, %v445
        %v447 = vpop.f32.mrb[0].mxu0
        %v448 = vadd.f32 %v338, %v447
        %449 = vdwg.mxu0
        %v450 = vmax.f32 %v432, 0.0
        %v451 = vmax.f32 %v434, 0.0
        %v452 = vmax.f32 %v436, 0.0
        %v453 = vmax.f32 %v438, 0.0
        %v454 = vmax.f32 %v442, 0.0
        %v455 = vmax.f32 %v444, 0.0
        %v456 = vmax.f32 %v446, 0.0
        %v457 = vmax.f32 %v448, 0.0
        %v458 = vld [vmem:[%s3] sm:$0xf]
        %v459 = vld [vmem:[%s3 + $0x4] sm:$0xf]
        %v460 = vld [vmem:[%s3 + $0x8] sm:$0xf]
        %v461 = vld [vmem:[%s3 + $0xc] sm:$0xf]
        %v462 = vld [vmem:[%s3 + $0x10] sm:$0xf]
        %v463 = vld [vmem:[%s3 + $0x14] sm:$0xf]
        %v464 = vld [vmem:[%s3 + $0x18] sm:$0xf]
        %v465 = vld [vmem:[%s3 + $0x1c] sm:$0xf]
        %v466 = vpack.c.bf16 %v452, %v450
        %v467 = vpack.c.bf16 %v453, %v451
        %v468 = vpack.c.bf16 %v456, %v454
        %v469 = vpack.c.bf16 %v457, %v455
        %v470 = vld [vmem:[%s4] sm:$0xff]
        %v471 = vld [vmem:[%s4 + $0x8] sm:$0xff]
        %v472 = vld [vmem:[%s4 + $0x10] sm:$0xff]
        %v473 = vld [vmem:[%s4 + $0x18] sm:$0xff]
        %v474 = vld [vmem:[%s4 + $0x20] sm:$0xff]
        %v475 = vld [vmem:[%s4 + $0x28] sm:$0xff]
        %v476 = vld [vmem:[%s4 + $0x30] sm:$0xff]
        %v477 = vld [vmem:[%s4 + $0x38] sm:$0xff]
        %479 = vset.pattern.permute.xlu0 0
        %480 = vperm.xlu0 %479, %v470
        %v481 = vpop.permute.xlu0 %480
        %484 = vset.pattern.permute.xlu0 0
        %485 = vperm.xlu0 %484, %v471
        %v486 = vpop.permute.xlu0 %485
        %489 = vset.pattern.permute.xlu0 0
        %490 = vperm.xlu0 %489, %v472
        %v491 = vpop.permute.xlu0 %490
        %494 = vset.pattern.permute.xlu0 0
        %495 = vperm.xlu0 %494, %v473
        %v496 = vpop.permute.xlu0 %495
        %499 = vset.pattern.permute.xlu0 0
        %500 = vperm.xlu0 %499, %v474
        %v501 = vpop.permute.xlu0 %500
        %504 = vset.pattern.permute.xlu0 0
        %505 = vperm.xlu0 %504, %v475
        %v506 = vpop.permute.xlu0 %505
        %509 = vset.pattern.permute.xlu0 0
        %510 = vperm.xlu0 %509, %v476
        %v511 = vpop.permute.xlu0 %510
        %514 = vset.pattern.permute.xlu0 0
        %515 = vperm.xlu0 %514, %v477
        %v516 = vpop.permute.xlu0 %515
        %v526 = vunpack.c.l.b16 %v458
        %v527 = vunpack.c.l.b16 %v459
        %v528 = vunpack.c.l.b16 %v460
        %v529 = vunpack.c.l.b16 %v461
        %v530 = vunpack.c.l.b16 %v462
        %v531 = vunpack.c.l.b16 %v463
        %v532 = vunpack.c.l.b16 %v464
        %v533 = vunpack.c.l.b16 %v465
        %v534 = vpack.c.b16 %v527, %v526
        %v535 = vpack.c.b16 %v529, %v528
        %v536 = vpack.c.b16 %v531, %v530
        %v537 = vpack.c.b16 %v533, %v532
        %vm538 = vcmask 261120
        %v540 = vsel %vm538, %v534, 0
        %v543 = vsel %vm538, %v535, 0
        %v546 = vsel %vm538, %v536, 0
        %v549 = vsel %vm538, %v537, 0
        %551 = vmatprep.subr.bf16.mxu0 %v467
        %552 = vmatpush1.bf16.msra.mxu0 %v466
        %553 = vmatprep.subr.bf16.mxu0 %v469
        %554 = vmatpush1.bf16.msra.mxu0 %v468
        %555 = vmatprep.subr.bf16.mxu0 0
        %556 = vmatpush1.bf16.msra.mxu0 0
        %557 = vmatprep.subr.bf16.mxu0 0
        %558 = vmatpush1.bf16.msra.mxu0 0
        %559 = vmatprep.subr.bf16.mxu0 0
        %560 = vmatpush1.bf16.msra.mxu0 0
        %561 = vmatprep.subr.bf16.mxu0 0
        %562 = vmatpush1.bf16.msra.mxu0 0
        %563 = vmatprep.subr.bf16.mxu0 0
        %564 = vmatpush1.bf16.msra.mxu0 0
        %565 = vmatprep.subr.bf16.mxu0 0
        %566 = vmatpush1.bf16.msra.mxu0 0
        %567 = vmatprep.subr.bf16.mxu0 0
        %568 = vmatpush1.bf16.msra.mxu0 0
        %569 = vmatprep.subr.bf16.mxu0 0
        %570 = vmatpush1.bf16.msra.mxu0 0
        %571 = vmatprep.subr.bf16.mxu0 0
        %572 = vmatpush1.bf16.msra.mxu0 0
        %573 = vmatprep.subr.bf16.mxu0 0
        %574 = vmatpush1.bf16.msra.mxu0 0
        %575 = vmatprep.subr.bf16.mxu0 0
        %576 = vmatpush1.bf16.msra.mxu0 0
        %577 = vmatprep.subr.bf16.mxu0 0
        %578 = vmatpush1.bf16.msra.mxu0 0
        %579 = vmatprep.subr.bf16.mxu0 0
        %580 = vmatpush1.bf16.msra.mxu0 0
        %581 = vmatprep.subr.bf16.mxu0 0
        %582 = vmatpush1.bf16.msra.mxu0 0
        %583 = vmatprep.mubr.bf16.mxu0 0
        %584 = vmatmul.mubr.bf16.gmra.mrb[0].mxu0 %v540
        %v585 = vpop.f32.mrb[0].mxu0
        %v586 = vadd.f32 %v481, %v585
        %v587 = vpop.f32.mrb[0].mxu0
        %v588 = vadd.f32 %v481, %v587
        %v589 = vpop.f32.mrb[0].mxu0
        %v590 = vadd.f32 %v486, %v589
        %v591 = vpop.f32.mrb[0].mxu0
        %v592 = vadd.f32 %v486, %v591
        %593 = vmatprep.mubr.bf16.mxu0 0
        %594 = vmatmul.mubr.bf16.gmra.mrb[0].mxu0 %v543
        %v595 = vpop.f32.mrb[0].mxu0
        %v596 = vadd.f32 %v491, %v595
        %v597 = vpop.f32.mrb[0].mxu0
        %v598 = vadd.f32 %v491, %v597
        %v599 = vpop.f32.mrb[0].mxu0
        %v600 = vadd.f32 %v496, %v599
        %v601 = vpop.f32.mrb[0].mxu0
        %v602 = vadd.f32 %v496, %v601
        %603 = vmatprep.mubr.bf16.mxu0 0
        %604 = vmatmul.mubr.bf16.gmra.mrb[0].mxu0 %v546
        %v605 = vpop.f32.mrb[0].mxu0
        %v606 = vadd.f32 %v501, %v605
        %v607 = vpop.f32.mrb[0].mxu0
        %v608 = vadd.f32 %v501, %v607
        %v609 = vpop.f32.mrb[0].mxu0
        %v610 = vadd.f32 %v506, %v609
        %v611 = vpop.f32.mrb[0].mxu0
        %v612 = vadd.f32 %v506, %v611
        %613 = vmatprep.mubr.bf16.mxu0 0
        %614 = vmatmul.mubr.bf16.gmra.mrb[0].mxu0 %v549
        %v615 = vpop.f32.mrb[0].mxu0
        %v616 = vadd.f32 %v511, %v615
        %v617 = vpop.f32.mrb[0].mxu0
        %v618 = vadd.f32 %v511, %v617
        %v619 = vpop.f32.mrb[0].mxu0
        %v620 = vadd.f32 %v516, %v619
        %v621 = vpop.f32.mrb[0].mxu0
        %v622 = vadd.f32 %v516, %v621
        %623 = vdwg.mxu0
        %v624 = vxor.u32 %v586, 2147483648
        %v625 = vxor.u32 %v588, 2147483648
        %v626 = vxor.u32 %v590, 2147483648
        %v627 = vxor.u32 %v592, 2147483648
        %v628 = vxor.u32 %v596, 2147483648
        %v629 = vxor.u32 %v598, 2147483648
        %v630 = vxor.u32 %v600, 2147483648
        %v631 = vxor.u32 %v602, 2147483648
        %v632 = vxor.u32 %v606, 2147483648
        %v633 = vxor.u32 %v608, 2147483648
        %v634 = vxor.u32 %v610, 2147483648
        %v635 = vxor.u32 %v612, 2147483648
        %v636 = vxor.u32 %v616, 2147483648
        %v637 = vxor.u32 %v618, 2147483648
        %v638 = vxor.u32 %v620, 2147483648
        %v639 = vxor.u32 %v622, 2147483648
        %v640 = vmul.f32 %v624, 1.442695
        %v641 = vpow.pop %v640
        %v642 = vmul.f32 %v625, 1.442695
        %v643 = vpow.pop %v642
        %v644 = vmul.f32 %v626, 1.442695
        %v645 = vpow.pop %v644
        %v646 = vmul.f32 %v627, 1.442695
        %v647 = vpow.pop %v646
        %v648 = vmul.f32 %v628, 1.442695
        %v649 = vpow.pop %v648
        %v650 = vmul.f32 %v629, 1.442695
        %v651 = vpow.pop %v650
        %v652 = vmul.f32 %v630, 1.442695
        %v653 = vpow.pop %v652
        %v654 = vmul.f32 %v631, 1.442695
        %v655 = vpow.pop %v654
        %v656 = vmul.f32 %v632, 1.442695
        %v657 = vpow.pop %v656
        %v658 = vmul.f32 %v633, 1.442695
        %v659 = vpow.pop %v658
        %v660 = vmul.f32 %v634, 1.442695
        %v661 = vpow.pop %v660
        %v662 = vmul.f32 %v635, 1.442695
        %v663 = vpow.pop %v662
        %v664 = vmul.f32 %v636, 1.442695
        %v665 = vpow.pop %v664
        %v666 = vmul.f32 %v637, 1.442695
        %v667 = vpow.pop %v666
        %v668 = vmul.f32 %v638, 1.442695
        %v669 = vpow.pop %v668
        %v670 = vmul.f32 %v639, 1.442695
        %v671 = vpow.pop %v670
        %v672 = vadd.f32 %v641, 1.0
        %v673 = vadd.f32 %v643, 1.0
        %v674 = vadd.f32 %v645, 1.0
        %v675 = vadd.f32 %v647, 1.0
        %v676 = vadd.f32 %v649, 1.0
        %v677 = vadd.f32 %v651, 1.0
        %v678 = vadd.f32 %v653, 1.0
        %v679 = vadd.f32 %v655, 1.0
        %v680 = vadd.f32 %v657, 1.0
        %v681 = vadd.f32 %v659, 1.0
        %v682 = vadd.f32 %v661, 1.0
        %v683 = vadd.f32 %v663, 1.0
        %v684 = vadd.f32 %v665, 1.0
        %v685 = vadd.f32 %v667, 1.0
        %v686 = vadd.f32 %v669, 1.0
        %v687 = vadd.f32 %v671, 1.0
        %v688 = vrcp.pop %v672
        %v689 = vmul.f32 1.0, %v688
        %v690 = vrcp.pop %v673
        %v691 = vmul.f32 1.0, %v690
        %v692 = vrcp.pop %v674
        %v693 = vmul.f32 1.0, %v692
        %v694 = vrcp.pop %v675
        %v695 = vmul.f32 1.0, %v694
        %v696 = vrcp.pop %v676
        %v697 = vmul.f32 1.0, %v696
        %v698 = vrcp.pop %v677
        %v699 = vmul.f32 1.0, %v698
        %v700 = vrcp.pop %v678
        %v701 = vmul.f32 1.0, %v700
        %v702 = vrcp.pop %v679
        %v703 = vmul.f32 1.0, %v702
        %v704 = vrcp.pop %v680
        %v705 = vmul.f32 1.0, %v704
        %v706 = vrcp.pop %v681
        %v707 = vmul.f32 1.0, %v706
        %v708 = vrcp.pop %v682
        %v709 = vmul.f32 1.0, %v708
        %v710 = vrcp.pop %v683
        %v711 = vmul.f32 1.0, %v710
        %v712 = vrcp.pop %v684
        %v713 = vmul.f32 1.0, %v712
        %v714 = vrcp.pop %v685
        %v715 = vmul.f32 1.0, %v714
        %v716 = vrcp.pop %v686
        %v717 = vmul.f32 1.0, %v716
        %v718 = vrcp.pop %v687
        %v719 = vmul.f32 1.0, %v718
        %720 = vst [vmem:[%s300] sm:$0xff] %v689
        %721 = vst [vmem:[%s300 + $0x8] sm:$0xff] %v691
        %722 = vst [vmem:[%s300 + $0x10] sm:$0xff] %v693
        %723 = vst [vmem:[%s300 + $0x18] sm:$0xff] %v695
        %724 = vst [vmem:[%s300 + $0x20] sm:$0xff] %v697
        %725 = vst [vmem:[%s300 + $0x28] sm:$0xff] %v699
        %726 = vst [vmem:[%s300 + $0x30] sm:$0xff] %v701
        %727 = vst [vmem:[%s300 + $0x38] sm:$0xff] %v703
        %728 = vst [vmem:[%s300 + $0x40] sm:$0xff] %v705
        %729 = vst [vmem:[%s300 + $0x48] sm:$0xff] %v707
        %730 = vst [vmem:[%s300 + $0x50] sm:$0xff] %v709
        %731 = vst [vmem:[%s300 + $0x58] sm:$0xff] %v711
        %732 = vst [vmem:[%s300 + $0x60] sm:$0xff] %v713
        %733 = vst [vmem:[%s300 + $0x68] sm:$0xff] %v715
        %734 = vst [vmem:[%s300 + $0x70] sm:$0xff] %v717
        %735 = vst [vmem:[%s300 + $0x78] sm:$0xff] %v719
        %s736 = sand.u32 %s138, 1
        %s737 = scalar_lea.sflag [#allocation5], %s736
        %s738 = sand.u32 %s138, 1
        %s739 = smul.addr %s738, 128
        %s740 = scalar_lea.vmem [#allocation6], %s739
        // Predicated region
        $region83: #{tpu_custom_call.1} parent=73 // pred_check
          %p741 = pneg %p148
        $region84: #{tpu_custom_call.1} parent=73 // pred_check_branch
          %743 = sbr.rel (%p741) target = $region86
        $region85: #{tpu_custom_call.1} parent=73 // pred_region
          %s744 = smul.u32 2, %s20
          %s746 = ssub.s32 2048, 2048
          %747 = vsyncadd %s737, %s746
          %s748 = smul.addr %s744, 128
          %s749 = scalar_lea.hbm %s5, %s748
          %s750 = sshll.u32 %s740, 4
          %s751 = int_to_ptr.vmem [resolvable:$true] %s750
          %756 = dma.vmem_to_hbm [thread:$0]  %s751, 2048, %s749, %s737, 256, 512, 16
        $region86: #{tpu_custom_call.1} parent=73 // pred_fallthru
          _
      $region74: #{tpu_custom_call.1} parent=5 // pred_fallthru
        _
      %p757 = scmp.le.s32.totalorder 2, %s15
      // Predicated region
      $region87: #{tpu_custom_call.1} parent=5 // pred_check
        %p758 = pneg %p757
      $region88: #{tpu_custom_call.1} parent=5 // pred_check_branch
        %760 = sbr.rel (%p758) target = $region90
      $region89: #{tpu_custom_call.1} parent=5 // pred_region
        %s761 = ssub.s32 %s15, 2
        // Predicated region
        $region91: #{tpu_custom_call.1} parent=89 // pred_check
          %p762 = pneg %p154
        $region92: #{tpu_custom_call.1} parent=89 // pred_check_branch
          %764 = sbr.rel (%p762) target = $region94
        $region93: #{tpu_custom_call.1} parent=89 // pred_region
          %s765 = sand.u32 %s139, 1
          %s766 = scalar_lea.sflag [#allocation5], %s765
          %s767 = sand.u32 %s139, 1
          %s768 = smul.addr %s767, 128
          %s769 = scalar_lea.vmem [#allocation6], %s768
          %770 = dma.done %s766, 2048
        $region94: #{tpu_custom_call.1} parent=89 // pred_fallthru
          _
      $region90: #{tpu_custom_call.1} parent=5 // pred_fallthru
        _
    $region6: #{tpu_custom_call.1} parent=1 // loop_footer
      %s19 = sadd.s32 1, %s15
    $region7: #{tpu_custom_call.1} parent=1 // loop_footer_branch
      %14 = sbr.rel target = $region3
    $region8: #{tpu_custom_call.1} parent=1 // loop_exit
      _
    %771 = vsyncpa [#allocation4], 1
    %s772 = scalar_lea.sflag [#allocation4], 1
    %773 = vsyncpa %s772, 1
    %774 = vsyncpa [#allocation5], 1
    %s775 = scalar_lea.sflag [#allocation5], 1
    %776 = vsyncpa %s775, 1

</llo_original>
